<compile_context>
chip_gen: v5e
topology: v5e:2x2
jax: 0.10.0
libtpu: 0.0.40
codegen_flags: <defaults>
</compile_context>

<pallas_src>
import functools

import jax
import jax.numpy as jnp
from jax.experimental import pallas as pl
from jax.experimental.pallas import tpu as pltpu

LN_EPS = 1e-5  # nn.LayerNorm default


def _adaln_kernel(x_ref, cond_ref, wt_ref, out_ref, *, d_real):
    # x_ref:    (tile_n, Dp)   tokens x (lane-padded) features
    # cond_ref: (tile_n, Dc)   tokens x condition features
    # wt_ref:   (Dc, Dp)       gamma projection, pre-transposed & lane-padded
    # out_ref:  (tile_n, Dp)
    x = x_ref[...].astype(jnp.float32)
    d_pad = x.shape[-1]
    inv_d = 1.0 / d_real

    # LayerNorm over the *real* feature count (padded lanes are zero-filled,
    # so they contribute nothing to the sums; center is masked to zero there).
    mean = jnp.sum(x, axis=-1, keepdims=True) * inv_d
    xc = x - mean
    if d_pad != d_real:
        lane = jax.lax.broadcasted_iota(jnp.int32, x.shape, 1)
        xc = jnp.where(lane < d_real, xc, 0.0)
    var = jnp.sum(xc * xc, axis=-1, keepdims=True) * inv_d
    normed = xc * jax.lax.rsqrt(var + LN_EPS)

    # gamma = condition @ W^T on the MXU.  Native dtypes in (bf16 stays bf16),
    # f32 accumulation out.  Padded weight columns are zero => gamma == 0 on
    # padded lanes, so (gamma + 1) leaves them harmless (sliced off outside).
    gamma = jnp.dot(cond_ref[...], wt_ref[...], preferred_element_type=jnp.float32)

    out_ref[...] = (normed * (gamma + 1.0)).astype(out_ref.dtype)


def adaptive_layer_norm(x, condition, gamma_weight, *, tile_n=512,
                        vmem_budget_bytes=48 * 1024 * 1024):
    """x: (B, S, D); condition: (B, S, Dc); gamma_weight: (D, Dc) (PyTorch layout)."""
    B, S, D = x.shape
    Dc = condition.shape[-1]
    N = B * S

    # Lane-dense feature dim: pad D up to a multiple of 128.
    Dp = ((D + 127) // 128) * 128

    # Sublane-aligned token tile: 16 rows for bf16 (packed sublanes), 8 for f32.
    sub = 16 if x.dtype == jnp.dtype(jnp.bfloat16) else 8
    tile_n = max(sub, (min(tile_n, N) // sub) * sub)

    x_bytes = jnp.dtype(x.dtype).itemsize
    c_bytes = jnp.dtype(condition.dtype).itemsize
    w_bytes = jnp.dtype(gamma_weight.dtype).itemsize

    def _vmem_need(tn):
        return (2 * tn * Dp * x_bytes      # x tiles, double-buffered
                + 2 * tn * Dp * x_bytes    # out tiles, double-buffered
                + 2 * tn * Dc * c_bytes    # cond tiles, double-buffered
                + Dc * Dp * w_bytes)       # resident weight, single-buffered

    # Shrink tile_n until the pipelined working set fits the budget
    # (48 MiB default keeps headroom even on v7x's 64 MiB VMEM per core).
    while tile_n > sub and _vmem_need(tile_n) > vmem_budget_bytes:
        tile_n -= sub

    Np = ((N + tile_n - 1) // tile_n) * tile_n  # row-pad to a whole grid

    x2 = x.reshape(N, D)
    c2 = condition.reshape(N, Dc)
    wt = gamma_weight.T  # (Dc, D): kernel computes cond @ wt

    if Dp != D:
        x2 = jnp.pad(x2, ((0, 0), (0, Dp - D)))
        wt = jnp.pad(wt, ((0, 0), (0, Dp - D)))
    if Np != N:
        x2 = jnp.pad(x2, ((0, Np - N), (0, 0)))
        c2 = jnp.pad(c2, ((0, Np - N), (0, 0)))

    vmem_limit = int(min(max(2 * _vmem_need(tile_n), 32 * 1024 * 1024),
                         64 * 1024 * 1024))

    out2 = pl.pallas_call(
        functools.partial(_adaln_kernel, d_real=D),
        out_shape=jax.ShapeDtypeStruct((Np, Dp), x.dtype),
        grid_spec=pltpu.PrefetchScalarGridSpec(
            num_scalar_prefetch=0,
            grid=(Np // tile_n,),
            in_specs=[
                pl.BlockSpec((tile_n, Dp), lambda i: (i, 0)),
                pl.BlockSpec((tile_n, Dc), lambda i: (i, 0)),
                # Constant index_map => weight stays resident; single-buffer it.
                pl.BlockSpec((Dc, Dp), lambda i: (0, 0),
                             pipeline_mode=pl.Buffered(1)),
            ],
            out_specs=pl.BlockSpec((tile_n, Dp), lambda i: (i, 0)),
        ),
        compiler_params=pltpu.CompilerParams(
            dimension_semantics=("parallel",),
            vmem_limit_bytes=vmem_limit,
        ),
    )(x2, c2, wt)

    return out2[:N, :D].reshape(B, S, D)


def _reference(x, condition, gamma_weight):
    x32 = x.astype(jnp.float32)
    mean = jnp.mean(x32, axis=-1, keepdims=True)
    var = jnp.mean((x32 - mean) ** 2, axis=-1, keepdims=True)
    normed = (x32 - mean) * jax.lax.rsqrt(var + LN_EPS)
    gamma = condition.astype(jnp.float32) @ gamma_weight.T.astype(jnp.float32)
    return (normed * (gamma + 1.0)).astype(x.dtype)


if __name__ == "__main__":
    key = jax.random.PRNGKey(0)

    # --- case 1: module-sized toy shapes (f32, zero-init gamma weight) ------
    B, S, D, Dc = 2, 8, 32, 32
    kx, kc, kw = jax.random.split(key, 3)
    x = jax.random.normal(kx, (B, S, D), dtype=jnp.float32)
    condition = jax.random.normal(kc, (B, S, Dc), dtype=jnp.float32)
    gamma_weight = jnp.zeros((D, Dc), dtype=jnp.float32)  # nn.init.zeros_

    out = jax.block_until_ready(adaptive_layer_norm(x, condition, gamma_weight))
    ref = _reference(x, condition, gamma_weight)
    assert out.shape == (B, S, D)
    assert jnp.allclose(out, ref, atol=1e-5, rtol=1e-5), "case 1 mismatch vs reference"

    # --- case 2: bf16 inputs, non-zero gamma weight, ragged token count -----
    B2, S2, D2, Dc2 = 2, 5, 128, 64
    k1, k2, k3 = jax.random.split(kw, 3)
    x_b = jax.random.normal(k1, (B2, S2, D2), dtype=jnp.float32).astype(jnp.bfloat16)
    c_b = jax.random.normal(k2, (B2, S2, Dc2), dtype=jnp.float32).astype(jnp.bfloat16)
    w_b = (0.02 * jax.random.normal(k3, (D2, Dc2), dtype=jnp.float32)).astype(jnp.bfloat16)

    out_b = jax.block_until_ready(adaptive_layer_norm(x_b, c_b, w_b))
    ref_b = _reference(x_b, c_b, w_b)
    assert out_b.shape == (B2, S2, D2)
    assert jnp.allclose(out_b.astype(jnp.float32), ref_b.astype(jnp.float32),
                        atol=2e-2, rtol=2e-2), "case 2 mismatch vs reference"

    print("KERNEL_OK")
</pallas_src>

<mosaic_0001>
module attributes {stable_mosaic.version = 11 : i64} {
  func.func @_adaln_kernel(%arg0: i32, %arg1: memref<16x128xf32, #tpu.memory_space<vmem>>, %arg2: memref<16x32xf32, #tpu.memory_space<vmem>>, %arg3: memref<32x128xf32, #tpu.memory_space<vmem>>, %arg4: memref<16x128xf32, #tpu.memory_space<vmem>>) attributes {dimension_semantics = [#tpu.dimension_semantics<parallel>], iteration_bounds = array<i64: 1>, scalar_prefetch = 0 : i64, scratch_operands = 0 : i64, tpu.core_type = #tpu.core_type<tc>, window_params = [{transform_indices = @transform_0, window_bounds = array<i64: 16, 128>}, {transform_indices = @transform_1, window_bounds = array<i64: 16, 32>}, {pipeline_mode = #tpu.pipeline_mode<synchronous>, transform_indices = @transform_2, window_bounds = array<i64: 32, 128>}, {transform_indices = @transform_3, window_bounds = array<i64: 16, 128>}]} {
    %c0 = arith.constant 0 : index
    %c0_0 = arith.constant 0 : index
    %0 = vector.load %arg1[%c0, %c0_0] : memref<16x128xf32, #tpu.memory_space<vmem>>, vector<16x128xf32>
    %cst = arith.constant dense<0.000000e+00> : vector<16xf32>
    %1 = vector.multi_reduction <add>, %0, %cst [1] : vector<16x128xf32> to vector<16xf32>
    %2 = vector.shape_cast %1 : vector<16xf32> to vector<16x1xf32>
    %cst_1 = arith.constant 3.125000e-02 : f32
    %3 = vector.broadcast %cst_1 : f32 to vector<16x1xf32>
    %4 = arith.mulf %2, %3 : vector<16x1xf32>
    %5 = vector.broadcast %4 : vector<16x1xf32> to vector<16x128xf32>
    %6 = arith.subf %0, %5 : vector<16x128xf32>
    %7 = tpu.iota {dimensions = array<i32: 1>} : vector<16x128xi32>
    %c32_i32 = arith.constant 32 : i32
    %8 = vector.broadcast %c32_i32 : i32 to vector<16x128xi32>
    %9 = arith.cmpi slt, %7, %8 : vector<16x128xi32>
    %cst_2 = arith.constant 0.000000e+00 : f32
    %10 = vector.broadcast %cst_2 : f32 to vector<16x128xf32>
    %11 = arith.select %9, %6, %10 : vector<16x128xi1>, vector<16x128xf32>
    %12 = arith.mulf %11, %11 : vector<16x128xf32>
    %cst_3 = arith.constant dense<0.000000e+00> : vector<16xf32>
    %13 = vector.multi_reduction <add>, %12, %cst_3 [1] : vector<16x128xf32> to vector<16xf32>
    %14 = vector.shape_cast %13 : vector<16xf32> to vector<16x1xf32>
    %cst_4 = arith.constant 3.125000e-02 : f32
    %15 = vector.broadcast %cst_4 : f32 to vector<16x1xf32>
    %16 = arith.mulf %14, %15 : vector<16x1xf32>
    %cst_5 = arith.constant 9.99999974E-6 : f32
    %17 = vector.broadcast %cst_5 : f32 to vector<16x1xf32>
    %18 = arith.addf %16, %17 : vector<16x1xf32>
    %19 = math.rsqrt %18 : vector<16x1xf32>
    %20 = vector.broadcast %19 : vector<16x1xf32> to vector<16x128xf32>
    %21 = arith.mulf %11, %20 : vector<16x128xf32>
    %c0_6 = arith.constant 0 : index
    %c0_7 = arith.constant 0 : index
    %22 = vector.load %arg2[%c0_6, %c0_7] : memref<16x32xf32, #tpu.memory_space<vmem>>, vector<16x32xf32>
    %c0_8 = arith.constant 0 : index
    %c0_9 = arith.constant 0 : index
    %23 = vector.load %arg3[%c0_8, %c0_9] : memref<32x128xf32, #tpu.memory_space<vmem>>, vector<32x128xf32>
    %cst_10 = arith.constant dense<0.000000e+00> : vector<16x128xf32>
    %24 = tpu.matmul %22, %23, %cst_10 {dimension_numbers = #tpu.dot_dimension_numbers<[1], [0], [0], [1], [0, 0, 1, 1], [], []>} : vector<16x32xf32>, vector<32x128xf32>, vector<16x128xf32> -> vector<16x128xf32>
    %cst_11 = arith.constant 1.000000e+00 : f32
    %25 = vector.broadcast %cst_11 : f32 to vector<16x128xf32>
    %26 = arith.addf %24, %25 : vector<16x128xf32>
    %27 = arith.mulf %21, %26 : vector<16x128xf32>
    %c0_12 = arith.constant 0 : index
    %c0_13 = arith.constant 0 : index
    %28 = vector.load %arg4[%c0_12, %c0_13] : memref<16x128xf32, #tpu.memory_space<vmem>>, vector<16x128xf32>
    tpu.vector_store %arg4[%c0_12, %c0_13], %27 {strides = array<i32>} : memref<16x128xf32, #tpu.memory_space<vmem>>, vector<16x128xf32>,
    return
  }
  func.func @transform_0(%arg0: i32) -> (i32, i32) {
    %c0_i32 = arith.constant 0 : i32
    %c0_i32_0 = arith.constant 0 : i32
    return %arg0, %c0_i32 : i32, i32
  }
  func.func @transform_1(%arg0: i32) -> (i32, i32) {
    %c0_i32 = arith.constant 0 : i32
    %c0_i32_0 = arith.constant 0 : i32
    return %arg0, %c0_i32 : i32, i32
  }
  func.func @transform_2(%arg0: i32) -> (i32, i32) {
    %c0_i32 = arith.constant 0 : i32
    %c0_i32_0 = arith.constant 0 : i32
    %c0_i32_1 = arith.constant 0 : i32
    return %c0_i32, %c0_i32_0 : i32, i32
  }
  func.func @transform_3(%arg0: i32) -> (i32, i32) {
    %c0_i32 = arith.constant 0 : i32
    %c0_i32_0 = arith.constant 0 : i32
    return %arg0, %c0_i32 : i32, i32
  }
}

</mosaic_0001>

<llo_original>
// kernel: tpu_custom_call.1
$region0: #{tpu_custom_call.1}
  #allocation0 [shape = 'u32[]', space=smem, size = 0x4, offset = 0x4, fixed_abs, tag = 'smem constant byte address 0x4 - core index']
  #allocation1 [shape = 'u32[72,128]{1,0:T(1,128)}', space=vmem, size = 0x9000, scoped, tag = 'internal scratch']
  %s0 = inlined_call_operand.hbm [shape: f32[16,128], index: 0, kind: input, shape index: {}]
  %s1 = inlined_call_operand.hbm [shape: f32[16,32], index: 1, kind: input, shape index: {}]
  %s2 = inlined_call_operand.hbm [shape: f32[32,128], index: 2, kind: input, shape index: {}]
  %s3 = inlined_call_operand.hbm [shape: f32[16,128], index: 3, kind: output, shape index: {}]
  %s4 = sld [smem:[#allocation0]]
  $region34: #{tpu_custom_call.1} parent=0
    _
  %s6 = ssub.s32 1, %s4
  %s7 = scalar_select 0, %s6, %s4
  $region1: #{tpu_custom_call.1} parent=0
    #allocation2 [shape = 'u8[8192]{0}', space=vmem, size = 0x2000, scoped, tag = 'input window, operand 0, single buffered']
    #allocation3 [shape = 's32[1]{0}', space=sflag, size = 0x4, scoped, tag = 'scoped memory for tpu_custom_call.1']
    #allocation4 [shape = 's32[1]{0}', space=sflag, size = 0x4, scoped, tag = 'scoped memory for tpu_custom_call.1']
    #allocation5 [shape = 'u8[8192]{0}', space=vmem, size = 0x2000, scoped, tag = 'input window, operand 1, single buffered']
    #allocation6 [shape = 's32[1]{0}', space=sflag, size = 0x4, scoped, tag = 'scoped memory for tpu_custom_call.1']
    #allocation7 [shape = 'u8[16384]{0}', space=vmem, size = 0x4000, scoped, tag = 'input window, operand 2, single buffered']
    #allocation8 [shape = 'u8[8192]{0}', space=vmem, size = 0x2000, scoped, tag = 'output window, operand 0, single buffered']
    %8 = vsyncpa [#allocation3], 0
    %9 = vsyncpa [#allocation6], 0
    %10 = vsyncpa [#allocation4], 0
    // Predicated region
    $region2: #{tpu_custom_call.1} parent=1 // pred_check
      _
    $region3: #{tpu_custom_call.1} parent=1 // pred_check_branch
      %12 = sbr.rel (0) target = $region5
    $region4: #{tpu_custom_call.1} parent=1 // pred_region
      %14 = vsyncadd [#allocation3], 0
      %s15 = sshll.u32 %s0, 4
      %s16 = int_to_ptr.hbm [resolvable:$true] %s15
      %s17 = sshll.u32 [#allocation2], 4
      %s18 = int_to_ptr.vmem [resolvable:$true] %s17
      %23 = dma.hbm_to_vmem [thread:$0]  %s16, 256, %s18, [#allocation3], 128, 128, 8
    $region5: #{tpu_custom_call.1} parent=1 // pred_fallthru
      _
    // Predicated region
    $region6: #{tpu_custom_call.1} parent=1 // pred_check
      _
    $region7: #{tpu_custom_call.1} parent=1 // pred_check_branch
      %25 = sbr.rel (0) target = $region9
    $region8: #{tpu_custom_call.1} parent=1 // pred_region
      %27 = vsyncadd [#allocation6], 0
      %s28 = sshll.u32 %s1, 4
      %s29 = int_to_ptr.hbm [resolvable:$true] %s28
      %s30 = sshll.u32 [#allocation5], 4
      %s31 = int_to_ptr.vmem [resolvable:$true] %s30
      %36 = dma.hbm_to_vmem [thread:$0]  %s29, 256, %s31, [#allocation6], 128, 128, 8
    $region9: #{tpu_custom_call.1} parent=1 // pred_fallthru
      _
    // Predicated region
    $region10: #{tpu_custom_call.1} parent=1 // pred_check
      _
    $region11: #{tpu_custom_call.1} parent=1 // pred_check_branch
      %38 = sbr.rel (0) target = $region13
    $region12: #{tpu_custom_call.1} parent=1 // pred_region
      %40 = vsyncadd [#allocation6], 0
      %s41 = sshll.u32 %s2, 4
      %s42 = int_to_ptr.hbm [resolvable:$true] %s41
      %s43 = sshll.u32 [#allocation7], 4
      %s44 = int_to_ptr.vmem [resolvable:$true] %s43
      %49 = dma.hbm_to_vmem [thread:$0]  %s42, 512, %s44, [#allocation6], 128, 128, 8
    $region13: #{tpu_custom_call.1} parent=1 // pred_fallthru
      _
    // Predicated region
    $region14: #{tpu_custom_call.1} parent=1 // pred_check
      _
    $region15: #{tpu_custom_call.1} parent=1 // pred_check_branch
      %51 = sbr.rel (0) target = $region17
    $region16: #{tpu_custom_call.1} parent=1 // pred_region
      %53 = dma.done [#allocation3], 256
    $region17: #{tpu_custom_call.1} parent=1 // pred_fallthru
      _
    // Predicated region
    $region18: #{tpu_custom_call.1} parent=1 // pred_check
      _
    $region19: #{tpu_custom_call.1} parent=1 // pred_check_branch
      %55 = sbr.rel (0) target = $region21
    $region20: #{tpu_custom_call.1} parent=1 // pred_region
      %57 = dma.done [#allocation6], 256
    $region21: #{tpu_custom_call.1} parent=1 // pred_fallthru
      _
    // Predicated region
    $region22: #{tpu_custom_call.1} parent=1 // pred_check
      _
    $region23: #{tpu_custom_call.1} parent=1 // pred_check_branch
      %59 = sbr.rel (0) target = $region25
    $region24: #{tpu_custom_call.1} parent=1 // pred_region
      %61 = dma.done [#allocation6], 512
    $region25: #{tpu_custom_call.1} parent=1 // pred_fallthru
      _
    %v62 = vld [vmem:[#allocation2] sm:$0xff]
    %v63 = vld [vmem:[#allocation2 + $0x8] sm:$0xff]
    %64 = vadd.xlane.f32.xlu0 %v62
    %v65 = vpop.xlane.xlu0 %64
    %66 = vadd.xlane.f32.xlu0 %v63
    %v67 = vpop.xlane.xlu0 %66
    %v68 = vmul.f32 %v65, 0.03125
    %v69 = vmul.f32 %v67, 0.03125
    %v70 = vsub.f32 %v62, %v68
    %v71 = vsub.f32 %v63, %v69
    %v72 = vlaneseq
    %v73 = vand.u32 %v72, 127
    %vm74 = vcmp.lt.s32.totalorder %v73, 32
    %v75 = vsel %vm74, %v70, 0.0
    %v76 = vsel %vm74, %v71, 0.0
    %v77 = vmul.f32 %v75, %v75
    %v78 = vmul.f32 %v76, %v76
    %79 = vadd.xlane.f32.xlu0 %v77
    %v80 = vpop.xlane.xlu0 %79
    %81 = vadd.xlane.f32.xlu0 %v78
    %v82 = vpop.xlane.xlu0 %81
    %v83 = vmul.f32 %v80, 0.03125
    %v84 = vmul.f32 %v82, 0.03125
    %v85 = vadd.f32 %v83, 1e-05
    %v86 = vadd.f32 %v84, 1e-05
    %v87 = vrsqrt.pop %v85
    %v88 = vmul.f32 %v87, %v85
    %v89 = vmul.f32 %v88, %v87
    %v90 = vmul.f32 0.5, %v89
    %v91 = vsub.f32 1.5, %v90
    %v92 = vmul.f32 %v87, %v91
    %vm93 = vweird.f32 %v85
    %vm94 = vweird.f32 %v87
    %vm95 = vmor %vm93, %vm94
    %v96 = vsel %vm95, %v87, %v92
    %v97 = vrsqrt.pop %v86
    %v98 = vmul.f32 %v97, %v86
    %v99 = vmul.f32 %v98, %v97
    %v100 = vmul.f32 0.5, %v99
    %v101 = vsub.f32 1.5, %v100
    %v102 = vmul.f32 %v97, %v101
    %vm103 = vweird.f32 %v86
    %vm104 = vweird.f32 %v97
    %vm105 = vmor %vm103, %vm104
    %v106 = vsel %vm105, %v97, %v102
    %v107 = vmul.f32 %v75, %v96
    %v108 = vmul.f32 %v76, %v106
    %v109 = vld [vmem:[#allocation5] sm:$0xff]
    %v110 = vld [vmem:[#allocation5 + $0x8] sm:$0xff]
    %v111 = vld [vmem:[#allocation7] sm:$0xff]
    %v112 = vld [vmem:[#allocation7 + $0x8] sm:$0xff]
    %v113 = vld [vmem:[#allocation7 + $0x10] sm:$0xff]
    %v114 = vld [vmem:[#allocation7 + $0x18] sm:$0xff]
    %vm115 = vcmask 261120
    %v117 = vsel %vm115, %v109, 0
    %v120 = vsel %vm115, %v110, 0
    %122 = vmatpush.msra.mxu0 0.0
    %123 = vmatpush.msra.mxu0 0.0
    %124 = vmatpush.msra.mxu0 0.0
    %125 = vmatpush.msra.mxu0 0.0
    %126 = vmatpush.msra.mxu0 0.0
    %127 = vmatpush.msra.mxu0 0.0
    %128 = vmatpush.msra.mxu0 0.0
    %129 = vmatpush.msra.mxu0 0.0
    %130 = vmatpush.msra.mxu0 0.0
    %131 = vmatpush.msra.mxu0 0.0
    %132 = vmatpush.msra.mxu0 0.0
    %133 = vmatpush.msra.mxu0 0.0
    %134 = vmatpush.msra.mxu0 %v114
    %135 = vmatpush.msra.mxu0 %v113
    %136 = vmatpush.msra.mxu0 %v112
    %137 = vmatpush.msra.mxu0 %v111
    %138 = vmatmul.f32.gmra.mxu0 %v117
    %v139 = vpop.f32.mrf.mxu0
    %v140 = vadd.f32 1.0, %v139
    %141 = vmatmul.f32.gmra.mxu0 %v120
    %v142 = vpop.f32.mrf.mxu0
    %v143 = vadd.f32 1.0, %v142
    %144 = vdwg.mxu0
    %v145 = vmul.f32 %v107, %v140
    %v146 = vmul.f32 %v108, %v143
    %147 = vst [vmem:[#allocation8] sm:$0xff] %v145
    %148 = vst [vmem:[#allocation8 + $0x8] sm:$0xff] %v146
    // Predicated region
    $region26: #{tpu_custom_call.1} parent=1 // pred_check
      _
    $region27: #{tpu_custom_call.1} parent=1 // pred_check_branch
      %150 = sbr.rel (0) target = $region29
    $region28: #{tpu_custom_call.1} parent=1 // pred_region
      %152 = vsyncadd [#allocation4], 0
      %s153 = sshll.u32 [#allocation8], 4
      %s154 = int_to_ptr.vmem [resolvable:$true] %s153
      %s155 = sshll.u32 %s3, 4
      %s156 = int_to_ptr.hbm [resolvable:$true] %s155
      %161 = dma.vmem_to_hbm [thread:$0]  %s154, 256, %s156, [#allocation4], 128, 128, 8
    $region29: #{tpu_custom_call.1} parent=1 // pred_fallthru
      _
    // Predicated region
    $region30: #{tpu_custom_call.1} parent=1 // pred_check
      _
    $region31: #{tpu_custom_call.1} parent=1 // pred_check_branch
      %163 = sbr.rel (0) target = $region33
    $region32: #{tpu_custom_call.1} parent=1 // pred_region
      %165 = dma.done [#allocation4], 256
    $region33: #{tpu_custom_call.1} parent=1 // pred_fallthru
      _
    %166 = vsyncpa [#allocation3], 1
    %167 = vsyncpa [#allocation6], 1
    %168 = vsyncpa [#allocation4], 1

</llo_original>
